<compile_context>
chip_gen: v5e
topology: v5e:2x2
jax: 0.10.0
libtpu: 0.0.40
codegen_flags: <defaults>
</compile_context>

<pallas_src>
import functools

import jax
import jax.numpy as jnp
from jax.experimental import pallas as pl
from jax.experimental.pallas import tpu as pltpu

_LANE = 128
_SUBLANE = 8


def _round_up(x, m):
    return ((x + m - 1) // m) * m


# --------------------------------------------------------------------------
# Kernel
# --------------------------------------------------------------------------
def highway_kernel(x_ref, w_ref, b_ref, o_ref):
    x = x_ref[...]                                   # (TM, Dp), input dtype
    dp = x.shape[-1]
    x_f32 = x.astype(jnp.float32)

    # Single fused matmul on the MXU: bf16 inputs, f32 accumulation.
    fused = jnp.dot(
        x.astype(jnp.bfloat16),
        w_ref[...],                                  # (Dp, 2*Dp) bf16, VMEM-resident
        preferred_element_type=jnp.float32,
    )                                                # (TM, 2*Dp) f32
    fused = fused + b_ref[...]                       # (1, 2*Dp) f32 bias broadcast

    # Dp is a multiple of 128, so both slices are vreg-tile aligned.
    trf_gate = jax.nn.sigmoid(fused[:, :dp])         # gate half (EUP path)
    h = jnp.maximum(fused[:, dp:], 0.0)              # transform half, relu

    # out = g*h + (1-g)*x  ==  x + g*(h - x)
    o_ref[...] = (x_f32 + trf_gate * (h - x_f32)).astype(o_ref.dtype)


# --------------------------------------------------------------------------
# One-time parameter prep (NOT in the hot path)
# --------------------------------------------------------------------------
def prepare_highway_params(w_trf, b_trf, w_fc, b_fc):
    """Fuse + transpose + pad the two PyTorch Linear layers.

    PyTorch Linear weights are (out_features, in_features); transpose to
    (D_in, D_out), zero-pad the feature dim to a multiple of 128 (lane-dense
    tiles, vreg-aligned slices), concatenate gate+transform along the output
    dim, and cast weights to bf16 for full-rate MXU.  Biases stay f32.
    """
    D = w_trf.shape[0]
    Dp = _round_up(D, _LANE)

    def pad_w(w):                                    # (D, D) (out,in) -> (Dp, Dp) (in,out)
        wt = jnp.asarray(w, jnp.float32).T
        return jnp.pad(wt, ((0, Dp - D), (0, Dp - D)))

    def pad_b(b):
        return jnp.pad(jnp.asarray(b, jnp.float32), (0, Dp - D))

    w_fused = jnp.concatenate([pad_w(w_trf), pad_w(w_fc)], axis=1).astype(jnp.bfloat16)
    b_fused = jnp.concatenate([pad_b(b_trf), pad_b(b_fc)]).reshape(1, 2 * Dp)
    return w_fused, b_fused                           # (Dp, 2*Dp) bf16, (1, 2*Dp) f32


# --------------------------------------------------------------------------
# Tiling / VMEM planning
# --------------------------------------------------------------------------
def _vmem_budget_bytes():
    """Per-generation VMEM budget used to size TM and vmem_limit_bytes."""
    try:
        kind = jax.devices()[0].device_kind.lower()
    except Exception:
        kind = ""
    if "v5" in kind or "v6" in kind:
        # 128 MiB physical VMEM: raise well above the 16/32 MiB scoped default.
        return 100 * 1024 * 1024
    # v7x (64 MiB physical) and unknown chips: stay conservative.
    return 48 * 1024 * 1024


def _plan(B, Dp, x_bytes, out_bytes, budget):
    """Pick TM and a vmem limit from the real footprint (not a hard-coded 32 MiB)."""
    # Resident operands: bf16 fused weight + f32 fused bias (single-buffered).
    resident = Dp * (2 * Dp) * 2 + (2 * Dp) * 4
    # Per TM-row streamed/scratch bytes: double-buffered x + out tiles plus
    # ~5 f32 feature-width planes of epilogue temporaries (fused result, gate,
    # relu, mix) living in compiler-managed scratch.
    per_row = 2 * Dp * x_bytes + 2 * Dp * out_bytes + 5 * Dp * 4
    headroom = 4 * 1024 * 1024

    avail = budget - resident - headroom
    tm_max = 1024
    if avail > 0:
        tm_max = min(tm_max, (avail // per_row) // _SUBLANE * _SUBLANE)
    tm_max = max(_SUBLANE, tm_max)

    # Target >= 4 grid steps (pipelining + both TensorCores on v7x); never
    # collapse to grid=(1,) when B allows more.
    tm_target = _round_up(max(1, pl.cdiv(B, 4)), _SUBLANE)
    tm = max(_SUBLANE, min(tm_max, tm_target))

    footprint = resident + tm * per_row + headroom
    vmem_limit = int(min(budget, max(footprint, 16 * 1024 * 1024)))
    return tm, vmem_limit


# --------------------------------------------------------------------------
# pallas_call wrapper
# --------------------------------------------------------------------------
@functools.partial(jax.jit, static_argnames=("tm", "single_buffer", "vmem_limit_bytes"))
def _highway_impl(y_k, w_fused, b_fused, *, tm, single_buffer, vmem_limit_bytes):
    B, D = y_k.shape
    Dp = w_fused.shape[0]
    Bp = pl.cdiv(B, tm) * tm

    # Pad rows to a TM multiple and features to Dp (no-op when already aligned).
    y_pad = y_k
    if (Bp, Dp) != (B, D):
        y_pad = jnp.pad(y_k, ((0, Bp - B), (0, Dp - D)))

    if single_buffer:
        # Constant index_map + single buffer: fused weight/bias are DMA'd once
        # and stay VMEM-resident without a redundant second buffer.
        w_spec = pl.BlockSpec((Dp, 2 * Dp), lambda i: (0, 0),
                              pipeline_mode=pl.Buffered(1))
        b_spec = pl.BlockSpec((1, 2 * Dp), lambda i: (0, 0),
                              pipeline_mode=pl.Buffered(1))
    else:
        w_spec = pl.BlockSpec((Dp, 2 * Dp), lambda i: (0, 0))
        b_spec = pl.BlockSpec((1, 2 * Dp), lambda i: (0, 0))

    out = pl.pallas_call(
        highway_kernel,
        out_shape=jax.ShapeDtypeStruct((Bp, Dp), y_k.dtype),
        grid_spec=pltpu.PrefetchScalarGridSpec(
            num_scalar_prefetch=0,
            grid=(Bp // tm,),
            in_specs=[
                pl.BlockSpec((tm, Dp), lambda i: (i, 0)),    # streamed x tiles
                w_spec,                                      # resident fused W
                b_spec,                                      # resident fused bias
            ],
            out_specs=pl.BlockSpec((tm, Dp), lambda i: (i, 0)),  # lane-dense
        ),
        compiler_params=pltpu.CompilerParams(
            dimension_semantics=("parallel",),               # both TCs on v7x
            vmem_limit_bytes=vmem_limit_bytes,
        ),
    )(y_pad, w_fused, b_fused)

    if (Bp, Dp) != (B, D):
        out = out[:B, :D]
    return out


_SINGLE_BUFFER_OK = True   # flipped to False if pl.Buffered(1) is rejected


def highway(y_k, w_fused, b_fused, *, tm=None):
    """Highway forward.  y_k: (B, D); params from prepare_highway_params."""
    global _SINGLE_BUFFER_OK
    B, D = y_k.shape
    Dp = w_fused.shape[0]
    assert w_fused.shape == (Dp, 2 * Dp) and Dp % _LANE == 0 and Dp >= D
    assert b_fused.shape == (1, 2 * Dp)
    # TODO(synk): for very large D (where the resident bf16 weight, 4*D^2 bytes,
    # no longer fits the v7x VMEM budget) add a weight-streaming path that
    # tiles the output-feature dim on a second grid axis instead of keeping
    # the whole fused W resident.

    x_bytes = jnp.dtype(y_k.dtype).itemsize
    tm_auto, vmem_limit = _plan(B, Dp, x_bytes, x_bytes, _vmem_budget_bytes())
    if tm is None:
        tm = tm_auto
    # Force a legal sublane multiple; a ragged B is padded (never dropped).
    tm = max(_SUBLANE, (int(tm) // _SUBLANE) * _SUBLANE)

    if _SINGLE_BUFFER_OK:
        try:
            return _highway_impl(y_k, w_fused, b_fused, tm=tm,
                                 single_buffer=True, vmem_limit_bytes=vmem_limit)
        except Exception:
            _SINGLE_BUFFER_OK = False   # installed JAX rejects Buffered(1)
    return _highway_impl(y_k, w_fused, b_fused, tm=tm,
                         single_buffer=False, vmem_limit_bytes=vmem_limit)


# --------------------------------------------------------------------------
# Pure-JAX reference (matches the PyTorch semantics, unpadded f32 params)
# --------------------------------------------------------------------------
def highway_ref(y_k, w_trf, b_trf, w_fc, b_fc):
    trf_gate = jax.nn.sigmoid(y_k @ w_trf.T + b_trf)
    carry_gate = 1.0 - trf_gate
    return trf_gate * jnp.maximum(y_k @ w_fc.T + b_fc, 0.0) + carry_gate * y_k


if __name__ == "__main__":
    key = jax.random.PRNGKey(0)
    B, D = 16, 32  # batch=16, y_k_size=32

    k_x, k_wt, k_bt, k_wf, k_bf = jax.random.split(key, 5)
    y_k = jax.random.normal(k_x, (B, D), dtype=jnp.float32)

    # PyTorch Linear shapes: weight (D, D) = (out, in), bias (D,).
    bound = 1.0 / jnp.sqrt(D)
    w_trf = jax.random.uniform(k_wt, (D, D), jnp.float32, -bound, bound)
    b_trf = jax.random.uniform(k_bt, (D,), jnp.float32, -bound, bound)
    w_fc = jax.random.uniform(k_wf, (D, D), jnp.float32, -bound, bound)
    b_fc = jax.random.uniform(k_bf, (D,), jnp.float32, -bound, bound)

    # One-time parameter prep (fused + transposed + padded to 128 + bf16).
    w_fused, b_fused = prepare_highway_params(w_trf, b_trf, w_fc, b_fc)

    out = highway(y_k, w_fused, b_fused)
    out = jax.block_until_ready(out)

    ref = highway_ref(y_k, w_trf, b_trf, w_fc, b_fc)
    assert out.shape == (B, D)
    # bf16 MXU inputs with f32 accumulation -> loosened tolerance vs f32 ref.
    assert jnp.allclose(out, ref, atol=3e-2, rtol=3e-2), "mismatch vs reference"

    print("KERNEL_OK")
</pallas_src>

<mosaic_0001>
module attributes {stable_mosaic.version = 11 : i64} {
  func.func @highway_kernel(%arg0: i32, %arg1: memref<8x128xf32, #tpu.memory_space<vmem>>, %arg2: memref<128x256xbf16, #tpu.memory_space<vmem>>, %arg3: memref<1x256xf32, #tpu.memory_space<vmem>>, %arg4: memref<8x128xf32, #tpu.memory_space<vmem>>) attributes {dimension_semantics = [#tpu.dimension_semantics<parallel>], iteration_bounds = array<i64: 2>, scalar_prefetch = 0 : i64, scratch_operands = 0 : i64, tpu.core_type = #tpu.core_type<tc>, window_params = [{transform_indices = @transform_0, window_bounds = array<i64: 8, 128>}, {pipeline_mode = #tpu.pipeline_mode<synchronous>, transform_indices = @transform_1, window_bounds = array<i64: 128, 256>}, {pipeline_mode = #tpu.pipeline_mode<synchronous>, transform_indices = @transform_2, window_bounds = array<i64: 1, 256>}, {transform_indices = @transform_3, window_bounds = array<i64: 8, 128>}]} {
    %c0 = arith.constant 0 : index
    %c0_0 = arith.constant 0 : index
    %0 = vector.load %arg1[%c0, %c0_0] : memref<8x128xf32, #tpu.memory_space<vmem>>, vector<8x128xf32>
    %1 = arith.truncf %0 : vector<8x128xf32> to vector<8x128xbf16>
    %c0_1 = arith.constant 0 : index
    %c0_2 = arith.constant 0 : index
    %2 = vector.load %arg2[%c0_1, %c0_2] : memref<128x256xbf16, #tpu.memory_space<vmem>>, vector<128x256xbf16>
    %cst = arith.constant dense<0.000000e+00> : vector<8x256xf32>
    %3 = tpu.matmul %1, %2, %cst {dimension_numbers = #tpu.dot_dimension_numbers<[1], [0], [0], [1], [0, 0, 1, 1], [], []>} : vector<8x128xbf16>, vector<128x256xbf16>, vector<8x256xf32> -> vector<8x256xf32>
    %c0_3 = arith.constant 0 : index
    %c0_4 = arith.constant 0 : index
    %4 = vector.load %arg3[%c0_3, %c0_4] : memref<1x256xf32, #tpu.memory_space<vmem>>, vector<1x256xf32>
    %5 = vector.broadcast %4 : vector<1x256xf32> to vector<8x256xf32>
    %6 = arith.addf %3, %5 : vector<8x256xf32>
    %7 = vector.extract_strided_slice %6 {offsets = [0, 0], sizes = [8, 128], strides = [1, 1]} : vector<8x256xf32> to vector<8x128xf32>
    %8 = arith.negf %7 : vector<8x128xf32>
    %9 = math.exp %8 : vector<8x128xf32>
    %cst_5 = arith.constant 1.000000e+00 : f32
    %10 = vector.broadcast %cst_5 : f32 to vector<8x128xf32>
    %11 = arith.addf %10, %9 : vector<8x128xf32>
    %12 = arith.divf %10, %11 : vector<8x128xf32>
    %13 = vector.extract_strided_slice %6 {offsets = [0, 128], sizes = [8, 128], strides = [1, 1]} : vector<8x256xf32> to vector<8x128xf32>
    %cst_6 = arith.constant 0.000000e+00 : f32
    %14 = vector.broadcast %cst_6 : f32 to vector<8x128xf32>
    %15 = arith.maximumf %13, %14 : vector<8x128xf32>
    %16 = arith.subf %15, %0 : vector<8x128xf32>
    %17 = arith.mulf %12, %16 : vector<8x128xf32>
    %18 = arith.addf %0, %17 : vector<8x128xf32>
    %c0_7 = arith.constant 0 : index
    %c0_8 = arith.constant 0 : index
    %19 = vector.load %arg4[%c0_7, %c0_8] : memref<8x128xf32, #tpu.memory_space<vmem>>, vector<8x128xf32>
    tpu.vector_store %arg4[%c0_7, %c0_8], %18 {strides = array<i32>} : memref<8x128xf32, #tpu.memory_space<vmem>>, vector<8x128xf32>,
    return
  }
  func.func @transform_0(%arg0: i32) -> (i32, i32) {
    %c0_i32 = arith.constant 0 : i32
    %c0_i32_0 = arith.constant 0 : i32
    return %arg0, %c0_i32 : i32, i32
  }
  func.func @transform_1(%arg0: i32) -> (i32, i32) {
    %c0_i32 = arith.constant 0 : i32
    %c0_i32_0 = arith.constant 0 : i32
    %c0_i32_1 = arith.constant 0 : i32
    return %c0_i32, %c0_i32_0 : i32, i32
  }
  func.func @transform_2(%arg0: i32) -> (i32, i32) {
    %c0_i32 = arith.constant 0 : i32
    %c0_i32_0 = arith.constant 0 : i32
    %c0_i32_1 = arith.constant 0 : i32
    return %c0_i32, %c0_i32_0 : i32, i32
  }
  func.func @transform_3(%arg0: i32) -> (i32, i32) {
    %c0_i32 = arith.constant 0 : i32
    %c0_i32_0 = arith.constant 0 : i32
    return %arg0, %c0_i32 : i32, i32
  }
}

module attributes {stable_mosaic.version = 11 : i64} {
  func.func @highway_kernel(%arg0: i32, %arg1: memref<8x128xf32, #tpu.memory_space<vmem>>, %arg2: memref<128x256xbf16, #tpu.memory_space<vmem>>, %arg3: memref<1x256xf32, #tpu.memory_space<vmem>>, %arg4: memref<8x128xf32, #tpu.memory_space<vmem>>) attributes {dimension_semantics = [#tpu.dimension_semantics<parallel>], iteration_bounds = array<i64: 2>, scalar_prefetch = 0 : i64, scratch_operands = 0 : i64, tpu.core_type = #tpu.core_type<tc>, window_params = [{transform_indices = @transform_0, window_bounds = array<i64: 8, 128>}, {pipeline_mode = #tpu.pipeline_mode<synchronous>, transform_indices = @transform_1, window_bounds = array<i64: 128, 256>}, {pipeline_mode = #tpu.pipeline_mode<synchronous>, transform_indices = @transform_2, window_bounds = array<i64: 1, 256>}, {transform_indices = @transform_3, window_bounds = array<i64: 8, 128>}]} {
    %c0 = arith.constant 0 : index
    %c0_0 = arith.constant 0 : index
    %0 = vector.load %arg1[%c0, %c0_0] : memref<8x128xf32, #tpu.memory_space<vmem>>, vector<8x128xf32>
    %1 = arith.truncf %0 : vector<8x128xf32> to vector<8x128xbf16>
    %c0_1 = arith.constant 0 : index
    %c0_2 = arith.constant 0 : index
    %2 = vector.load %arg2[%c0_1, %c0_2] : memref<128x256xbf16, #tpu.memory_space<vmem>>, vector<128x256xbf16>
    %cst = arith.constant dense<0.000000e+00> : vector<8x256xf32>
    %3 = tpu.matmul %1, %2, %cst {dimension_numbers = #tpu.dot_dimension_numbers<[1], [0], [0], [1], [0, 0, 1, 1], [], []>} : vector<8x128xbf16>, vector<128x256xbf16>, vector<8x256xf32> -> vector<8x256xf32>
    %c0_3 = arith.constant 0 : index
    %c0_4 = arith.constant 0 : index
    %4 = vector.load %arg3[%c0_3, %c0_4] : memref<1x256xf32, #tpu.memory_space<vmem>>, vector<1x256xf32>
    %5 = vector.broadcast %4 : vector<1x256xf32> to vector<8x256xf32>
    %6 = arith.addf %3, %5 : vector<8x256xf32>
    %7 = vector.extract_strided_slice %6 {offsets = [0, 0], sizes = [8, 128], strides = [1, 1]} : vector<8x256xf32> to vector<8x128xf32>
    %8 = arith.negf %7 : vector<8x128xf32>
    %9 = math.exp %8 : vector<8x128xf32>
    %cst_5 = arith.constant 1.000000e+00 : f32
    %10 = vector.broadcast %cst_5 : f32 to vector<8x128xf32>
    %11 = arith.addf %10, %9 : vector<8x128xf32>
    %12 = arith.divf %10, %11 : vector<8x128xf32>
    %13 = vector.extract_strided_slice %6 {offsets = [0, 128], sizes = [8, 128], strides = [1, 1]} : vector<8x256xf32> to vector<8x128xf32>
    %cst_6 = arith.constant 0.000000e+00 : f32
    %14 = vector.broadcast %cst_6 : f32 to vector<8x128xf32>
    %15 = arith.maximumf %13, %14 : vector<8x128xf32>
    %16 = arith.subf %15, %0 : vector<8x128xf32>
    %17 = arith.mulf %12, %16 : vector<8x128xf32>
    %18 = arith.addf %0, %17 : vector<8x128xf32>
    %c0_7 = arith.constant 0 : index
    %c0_8 = arith.constant 0 : index
    %19 = vector.load %arg4[%c0_7, %c0_8] : memref<8x128xf32, #tpu.memory_space<vmem>>, vector<8x128xf32>
    tpu.vector_store %arg4[%c0_7, %c0_8], %18 {strides = array<i32>} : memref<8x128xf32, #tpu.memory_space<vmem>>, vector<8x128xf32>,
    return
  }
  func.func @transform_0(%arg0: i32) -> (i32, i32) {
    %c0_i32 = arith.constant 0 : i32
    %c0_i32_0 = arith.constant 0 : i32
    return %arg0, %c0_i32 : i32, i32
  }
  func.func @transform_1(%arg0: i32) -> (i32, i32) {
    %c0_i32 = arith.constant 0 : i32
    %c0_i32_0 = arith.constant 0 : i32
    %c0_i32_1 = arith.constant 0 : i32
    return %c0_i32, %c0_i32_0 : i32, i32
  }
  func.func @transform_2(%arg0: i32) -> (i32, i32) {
    %c0_i32 = arith.constant 0 : i32
    %c0_i32_0 = arith.constant 0 : i32
    %c0_i32_1 = arith.constant 0 : i32
    return %c0_i32, %c0_i32_0 : i32, i32
  }
  func.func @transform_3(%arg0: i32) -> (i32, i32) {
    %c0_i32 = arith.constant 0 : i32
    %c0_i32_0 = arith.constant 0 : i32
    return %arg0, %c0_i32 : i32, i32
  }
}

</mosaic_0001>

<llo_original>
// kernel: _highway_impl.1
$region0: #{_highway_impl.1}
  #allocation0 [shape = 'u32[]', space=smem, size = 0x4, offset = 0x4, fixed_abs, tag = 'smem constant byte address 0x4 - core index']
  #allocation1 [shape = 'u32[72,128]{1,0:T(1,128)}', space=vmem, size = 0x9000, scoped, tag = 'internal scratch']
  %s0 = inlined_call_operand.vmem [shape: f32[16,128], index: 0, kind: input, shape index: {}]
  %s1 = inlined_call_operand.hbm [shape: bf16[128,256], index: 1, kind: input, shape index: {}]
  %s2 = inlined_call_operand.vmem [shape: f32[1,256], index: 2, kind: input, shape index: {}]
  %s3 = inlined_call_operand.hbm [shape: f32[16,128], index: 3, kind: output, shape index: {}]
  %s4 = sld [smem:[#allocation0]]
  $region49: #{_highway_impl.1} parent=0
    _
  %s6 = ssub.s32 1, %s4
  %s7 = scalar_select 0, %s6, %s4
  $region1: #{_highway_impl.1} parent=0
    #allocation2 [shape = 'u8[65536]{0}', space=vmem, size = 0x10000, scoped, tag = 'input window, operand 1, single buffered']
    #allocation3 [shape = 's32[2]{0}', space=sflag, size = 0x8, scoped, tag = 'scoped memory for _highway_impl.1']
    #allocation4 [shape = 's32[2]{0}', space=sflag, size = 0x8, scoped, tag = 'scoped memory for _highway_impl.1']
    #allocation5 [shape = 'u8[8192]{0}', space=vmem, size = 0x2000, scoped, tag = 'output window, operand 0']
    %8 = vsyncpa [#allocation3], 0
    %9 = vsyncpa [#allocation4], 0
    %s10 = scalar_lea.sflag [#allocation4], 1
    %11 = vsyncpa %s10, 0
    loop: start=0, step=1, limit=4
    $region2: #{_highway_impl.1} parent=1 // loop_pre_header
      _
    $region3: #{_highway_impl.1} parent=1 // loop_header
      %s13 = sphi 0, %s17
      %p14 = scmp.ge.s32.totalorder %s13, 4
      %s23 = sphi 0, %s25
      %s26 = sphi 0, %s23
      %s27 = sphi 0, %s26
      %s43 = sphi 0, %s27
      %s47 = sphi 0, %s47
      %s49 = sphi 0, %s47
      %s50 = sphi 0, %s49
      %s64 = sphi 0, %s50
      %s68 = sphi 0, %s68
      %s70 = sphi 0, %s68
      %s71 = sphi 0, %s70
      %s85 = sphi 0, %s71
      %s91 = sphi 0, %s93
      %s94 = sphi 0, %s91
      %s95 = sphi 0, %s94
      %s111 = sphi 0, %s95
    $region4: #{_highway_impl.1} parent=1 // loop_header_branch
      %16 = sbr.rel (%p14) target = $region8
    $region5: #{_highway_impl.1} parent=1 // loop_body
      %s18 = ssub.s32 %s13, 1
      %s19 = ssub.s32 %s13, 2
      %s20 = sadd.s32 %s13, 1
      %s21 = ssub.s32 %s13, %s20
      %p22 = scmp.eq.s32.totalorder %s21, 0
      %s24 = sadd.s32 %s23, 1
      %s25 = scalar_select %p22, %s23, %s24
      %p28 = pneg %p22
      %p29 = scmp.eq.s32.totalorder %s13, 1
      %p30 = por %p28, %p29
      %p31 = scmp.ne.s32.totalorder %s23, %s26
      %p32 = scmp.eq.s32.totalorder %s13, 0
      %p33 = por %p31, %p32
      %p34 = scmp.ne.s32.totalorder %s23, %s26
      %p35 = scmp.eq.s32.totalorder %s18, 1
      %p36 = por %p34, %p35
      %p37 = scmp.ne.s32.totalorder %s26, %s27
      %p38 = scmp.eq.s32.totalorder %s18, 0
      %p39 = por %p37, %p38
      %p40 = scmp.ne.s32.totalorder %s26, %s27
      %p41 = scmp.eq.s32.totalorder %s19, 1
      %p42 = por %p40, %p41
      %p44 = scmp.ne.s32.totalorder %s27, %s43
      %p45 = scmp.eq.s32.totalorder %s19, 0
      %p46 = por %p44, %p45
      %s48 = sadd.s32 %s47, 1
      %p51 = scmp.eq.s32.totalorder %s13, 1
      %p52 = scmp.ne.s32.totalorder %s47, %s49
      %p53 = scmp.eq.s32.totalorder %s13, 0
      %p54 = por %p52, %p53
      %p55 = scmp.ne.s32.totalorder %s47, %s49
      %p56 = scmp.eq.s32.totalorder %s18, 1
      %p57 = por %p55, %p56
      %p58 = scmp.ne.s32.totalorder %s49, %s50
      %p59 = scmp.eq.s32.totalorder %s18, 0
      %p60 = por %p58, %p59
      %p61 = scmp.ne.s32.totalorder %s49, %s50
      %p62 = scmp.eq.s32.totalorder %s19, 1
      %p63 = por %p61, %p62
      %p65 = scmp.ne.s32.totalorder %s50, %s64
      %p66 = scmp.eq.s32.totalorder %s19, 0
      %p67 = por %p65, %p66
      %s69 = sadd.s32 %s68, 1
      %p72 = scmp.eq.s32.totalorder %s13, 1
      %p73 = scmp.ne.s32.totalorder %s68, %s70
      %p74 = scmp.eq.s32.totalorder %s13, 0
      %p75 = por %p73, %p74
      %p76 = scmp.ne.s32.totalorder %s68, %s70
      %p77 = scmp.eq.s32.totalorder %s18, 1
      %p78 = por %p76, %p77
      %p79 = scmp.ne.s32.totalorder %s70, %s71
      %p80 = scmp.eq.s32.totalorder %s18, 0
      %p81 = por %p79, %p80
      %p82 = scmp.ne.s32.totalorder %s70, %s71
      %p83 = scmp.eq.s32.totalorder %s19, 1
      %p84 = por %p82, %p83
      %p86 = scmp.ne.s32.totalorder %s71, %s85
      %p87 = scmp.eq.s32.totalorder %s19, 0
      %p88 = por %p86, %p87
      %s89 = ssub.s32 %s13, %s20
      %p90 = scmp.eq.s32.totalorder %s89, 0
      %s92 = sadd.s32 %s91, 1
      %s93 = scalar_select %p90, %s91, %s92
      %p96 = pneg %p90
      %p97 = scmp.eq.s32.totalorder %s13, 1
      %p98 = por %p96, %p97
      %p99 = scmp.ne.s32.totalorder %s91, %s94
      %p100 = scmp.eq.s32.totalorder %s13, 0
      %p101 = por %p99, %p100
      %p102 = scmp.ne.s32.totalorder %s91, %s94
      %p103 = scmp.eq.s32.totalorder %s18, 1
      %p104 = por %p102, %p103
      %p105 = scmp.ne.s32.totalorder %s94, %s95
      %p106 = scmp.eq.s32.totalorder %s18, 0
      %p107 = por %p105, %p106
      %p108 = scmp.ne.s32.totalorder %s94, %s95
      %p109 = scmp.eq.s32.totalorder %s19, 1
      %p110 = por %p108, %p109
      %p112 = scmp.ne.s32.totalorder %s95, %s111
      %p113 = scmp.eq.s32.totalorder %s19, 0
      %p114 = por %p112, %p113
      %p115 = scmp.le.s32.totalorder 1, %s13
      %p116 = scmp.lt.s32.totalorder %s13, 3
      %p117 = pnand %p115, %p116
      %p118 = pneg %p117
      // Predicated region
      $region9: #{_highway_impl.1} parent=5 // pred_check
        _
      $region10: #{_highway_impl.1} parent=5 // pred_check_branch
        %120 = sbr.rel (%p117) target = $region12
      $region11: #{_highway_impl.1} parent=5 // pred_region
        %s121 = ssub.s32 %s13, 1
        // Predicated region
        $region13: #{_highway_impl.1} parent=11 // pred_check
          %p122 = pneg %p60
        $region14: #{_highway_impl.1} parent=11 // pred_check_branch
          %124 = sbr.rel (%p122) target = $region16
        $region15: #{_highway_impl.1} parent=11 // pred_region
          %126 = vsyncadd [#allocation3], 0
          %s127 = sshll.u32 %s1, 4
          %s128 = int_to_ptr.hbm [resolvable:$true] %s127
          %s129 = sshll.u32 [#allocation2], 4
          %s130 = int_to_ptr.vmem [resolvable:$true] %s129
          %135 = dma.hbm_to_vmem [thread:$0]  %s128, 2048, %s130, [#allocation3], 128, 128, 8
        $region16: #{_highway_impl.1} parent=11 // pred_fallthru
          _
        // Predicated region
        $region17: #{_highway_impl.1} parent=11 // pred_check
          %p136 = pneg %p81
        $region18: #{_highway_impl.1} parent=11 // pred_check_branch
          %138 = sbr.rel (%p136) target = $region20
        $region19: #{_highway_impl.1} parent=11 // pred_region
          _
        $region20: #{_highway_impl.1} parent=11 // pred_fallthru
          _
      $region12: #{_highway_impl.1} parent=5 // pred_fallthru
        _
      %p139 = scmp.lt.s32.totalorder %s13, 2
      // Predicated region
      $region21: #{_highway_impl.1} parent=5 // pred_check
        %p140 = pneg %p139
      $region22: #{_highway_impl.1} parent=5 // pred_check_branch
        %142 = sbr.rel (%p140) target = $region24
      $region23: #{_highway_impl.1} parent=5 // pred_region
        // Predicated region
        $region25: #{_highway_impl.1} parent=23 // pred_check
          %p143 = pneg %p33
        $region26: #{_highway_impl.1} parent=23 // pred_check_branch
          %145 = sbr.rel (%p143) target = $region28
        $region27: #{_highway_impl.1} parent=23 // pred_region
          %p146 = scmp.lt.s32.totalorder %s13, 1
          %s147 = scalar_select %p146, %s13, 1
          %s148 = smul.addr %s147, 8
          %s149 = scalar_lea.vmem %s0, %s148
        $region28: #{_highway_impl.1} parent=23 // pred_fallthru
          _
      $region24: #{_highway_impl.1} parent=5 // pred_fallthru
        _
      %p150 = scmp.le.s32.totalorder 1, %s13
      %p151 = scmp.lt.s32.totalorder %s13, 3
      %p152 = pnand %p150, %p151
      %p153 = pneg %p152
      // Predicated region
      $region29: #{_highway_impl.1} parent=5 // pred_check
        _
      $region30: #{_highway_impl.1} parent=5 // pred_check_branch
        %155 = sbr.rel (%p152) target = $region32
      $region31: #{_highway_impl.1} parent=5 // pred_region
        %s156 = ssub.s32 %s13, 1
        // Predicated region
        $region33: #{_highway_impl.1} parent=31 // pred_check
          %p157 = pneg %p60
        $region34: #{_highway_impl.1} parent=31 // pred_check_branch
          %159 = sbr.rel (%p157) target = $region36
        $region35: #{_highway_impl.1} parent=31 // pred_region
          %161 = dma.done [#allocation3], 2048
        $region36: #{_highway_impl.1} parent=31 // pred_fallthru
          _
        %p162 = scmp.lt.s32.totalorder %s18, 1
        %s163 = scalar_select %p162, %s18, 1
        %s164 = smul.addr %s163, 8
        %s165 = scalar_lea.vmem %s0, %s164
        %p166 = pneg %p39
        %p167 = pneg %p36
        %p168 = pneg %p60
        %p169 = pneg %p57
        %p170 = pneg %p81
        %p171 = pneg %p78
        %p172 = pneg %p107
        %p173 = pneg %p104
        %s174 = sand.u32 %s94, 1
        %s175 = scalar_lea.sflag [#allocation4], %s174
        %s176 = sand.u32 %s94, 1
        %s177 = smul.addr %s176, 8
        %s178 = scalar_lea.vmem [#allocation5], %s177
        %p179 = scmp.lt.s32.totalorder %s18, 1
        %s180 = scalar_select %p179, %s18, 1
        %s181 = smul.addr %s180, 8
        %s182 = scalar_lea.vmem %s0, %s181
        %v183 = vld [vmem:[%s182] sm:$0xff]
        %v184 = vpack.c.bf16 %v183, %v183
        %v185 = vld [vmem:[#allocation2] sm:$0xff]
        %v186 = vld [vmem:[#allocation2 + $0x8] sm:$0xff]
        %v187 = vld [vmem:[#allocation2 + $0x10] sm:$0xff]
        %v188 = vld [vmem:[#allocation2 + $0x18] sm:$0xff]
        %v189 = vld [vmem:[#allocation2 + $0x20] sm:$0xff]
        %v190 = vld [vmem:[#allocation2 + $0x28] sm:$0xff]
        %v191 = vld [vmem:[#allocation2 + $0x30] sm:$0xff]
        %v192 = vld [vmem:[#allocation2 + $0x38] sm:$0xff]
        %v193 = vld [vmem:[#allocation2 + $0x40] sm:$0xff]
        %v194 = vld [vmem:[#allocation2 + $0x48] sm:$0xff]
        %v195 = vld [vmem:[#allocation2 + $0x50] sm:$0xff]
        %v196 = vld [vmem:[#allocation2 + $0x58] sm:$0xff]
        %v197 = vld [vmem:[#allocation2 + $0x60] sm:$0xff]
        %v198 = vld [vmem:[#allocation2 + $0x68] sm:$0xff]
        %v199 = vld [vmem:[#allocation2 + $0x70] sm:$0xff]
        %v200 = vld [vmem:[#allocation2 + $0x78] sm:$0xff]
        %v201 = vld [vmem:[%s2] sm:$0x3]
        %v203 = vperm.slane %v201, 0
        %v204 = vperm.slane %v201, 1
        %v223 = vunpack.c.l.b16 %v185
        %v224 = vunpack.c.h.b16 %v185
        %v225 = vunpack.c.l.b16 %v186
        %v226 = vunpack.c.h.b16 %v186
        %v227 = vunpack.c.l.b16 %v187
        %v228 = vunpack.c.h.b16 %v187
        %v229 = vunpack.c.l.b16 %v188
        %v230 = vunpack.c.h.b16 %v188
        %v231 = vunpack.c.l.b16 %v189
        %v232 = vunpack.c.h.b16 %v189
        %v233 = vunpack.c.l.b16 %v190
        %v234 = vunpack.c.h.b16 %v190
        %v235 = vunpack.c.l.b16 %v191
        %v236 = vunpack.c.h.b16 %v191
        %v237 = vunpack.c.l.b16 %v192
        %v238 = vunpack.c.h.b16 %v192
        %v239 = vunpack.c.l.b16 %v193
        %v240 = vunpack.c.h.b16 %v193
        %v241 = vunpack.c.l.b16 %v194
        %v242 = vunpack.c.h.b16 %v194
        %v243 = vunpack.c.l.b16 %v195
        %v244 = vunpack.c.h.b16 %v195
        %v245 = vunpack.c.l.b16 %v196
        %v246 = vunpack.c.h.b16 %v196
        %v247 = vunpack.c.l.b16 %v197
        %v248 = vunpack.c.h.b16 %v197
        %v249 = vunpack.c.l.b16 %v198
        %v250 = vunpack.c.h.b16 %v198
        %v251 = vunpack.c.l.b16 %v199
        %v252 = vunpack.c.h.b16 %v199
        %v253 = vunpack.c.l.b16 %v200
        %v254 = vunpack.c.h.b16 %v200
        %v255 = vpack.c.b16 %v225, %v223
        %v256 = vpack.c.b16 %v226, %v224
        %v257 = vpack.c.b16 %v229, %v227
        %v258 = vpack.c.b16 %v230, %v228
        %v259 = vpack.c.b16 %v233, %v231
        %v260 = vpack.c.b16 %v234, %v232
        %v261 = vpack.c.b16 %v237, %v235
        %v262 = vpack.c.b16 %v238, %v236
        %v263 = vpack.c.b16 %v241, %v239
        %v264 = vpack.c.b16 %v242, %v240
        %v265 = vpack.c.b16 %v245, %v243
        %v266 = vpack.c.b16 %v246, %v244
        %v267 = vpack.c.b16 %v249, %v247
        %v268 = vpack.c.b16 %v250, %v248
        %v269 = vpack.c.b16 %v253, %v251
        %v270 = vpack.c.b16 %v254, %v252
        %287 = vmatpush.bf16.msra.mxu0 %v269
        %288 = vmatpush.bf16.msra.mxu0 %v267
        %289 = vmatpush.bf16.msra.mxu0 %v265
        %290 = vmatpush.bf16.msra.mxu0 %v263
        %291 = vmatpush.bf16.msra.mxu0 %v261
        %292 = vmatpush.bf16.msra.mxu0 %v259
        %293 = vmatpush.bf16.msra.mxu0 %v257
        %294 = vmatpush.bf16.msra.mxu0 %v255
        %295 = vmatmul.bf16.gmra.mxu0 %v184
        %v296 = vpop.f32.mrf.mxu0
        %v297 = vadd.f32 %v203, %v296
        %v298 = vpop.f32.mrf.mxu0
        %299 = vdwg.mxu0
        %300 = vmatpush.bf16.msra.mxu0 %v270
        %301 = vmatpush.bf16.msra.mxu0 %v268
        %302 = vmatpush.bf16.msra.mxu0 %v266
        %303 = vmatpush.bf16.msra.mxu0 %v264
        %304 = vmatpush.bf16.msra.mxu0 %v262
        %305 = vmatpush.bf16.msra.mxu0 %v260
        %306 = vmatpush.bf16.msra.mxu0 %v258
        %307 = vmatpush.bf16.msra.mxu0 %v256
        %308 = vmatmul.bf16.gmra.mxu0 %v184
        %v309 = vpop.f32.mrf.mxu0
        %v310 = vadd.f32 %v204, %v309
        %v311 = vpop.f32.mrf.mxu0
        %312 = vdwg.mxu0
        %v313 = vxor.u32 %v297, 2147483648
        %v314 = vmul.f32 %v313, 1.442695
        %v315 = vpow.pop %v314
        %v316 = vadd.f32 %v315, 1.0
        %v317 = vrcp.pop %v316
        %v318 = vmul.f32 %v316, %v317
        %v319 = vsub.f32 1.0, %v318
        %v320 = vmul.f32 %v317, %v319
        %v321 = vadd.f32 %v317, %v320
        %vm322 = vweird.f32 %v316
        %vm323 = vweird.f32 %v317
        %vm324 = vmor %vm322, %vm323
        %v325 = vsel %vm324, %v317, %v321
        %v326 = vand.u32 2147483647, %v316
        %vm327 = vcmp.eq.f32.partialorder %v326, 8.507059e+37
        %v328 = vand.u32 %v316, 2147483648
        %v329 = vor.u32 1.1754944e-38, %v328
        %v330 = vsel %vm327, %v329, %v325
        %v331 = vmul.f32 1.0, %v330
        %v332 = vmax.f32 %v310, 0.0
        %v333 = vsub.f32 %v332, %v183
        %v334 = vmul.f32 %v331, %v333
        %v335 = vadd.f32 %v183, %v334
        %336 = vst [vmem:[%s178] sm:$0xff] %v335
        %s337 = sand.u32 %s94, 1
        %s338 = scalar_lea.sflag [#allocation4], %s337
        %s339 = sand.u32 %s94, 1
        %s340 = smul.addr %s339, 8
        %s341 = scalar_lea.vmem [#allocation5], %s340
        // Predicated region
        $region37: #{_highway_impl.1} parent=31 // pred_check
          %p342 = pneg %p104
        $region38: #{_highway_impl.1} parent=31 // pred_check_branch
          %344 = sbr.rel (%p342) target = $region40
        $region39: #{_highway_impl.1} parent=31 // pred_region
          %346 = vsyncadd %s338, 0
          %s347 = smul.addr %s18, 8
          %s348 = scalar_lea.hbm %s3, %s347
          %s350 = sshll.u32 %s341, 4
          %s351 = int_to_ptr.vmem [resolvable:$true] %s350
          %s352 = sshll.u32 %s348, 4
          %s353 = int_to_ptr.hbm [resolvable:$true] %s352
          %355 = dma.vmem_to_hbm [thread:$0]  %s351, 128, %s353, %s338
        $region40: #{_highway_impl.1} parent=31 // pred_fallthru
          _
      $region32: #{_highway_impl.1} parent=5 // pred_fallthru
        _
      %p356 = scmp.le.s32.totalorder 2, %s13
      // Predicated region
      $region41: #{_highway_impl.1} parent=5 // pred_check
        %p357 = pneg %p356
      $region42: #{_highway_impl.1} parent=5 // pred_check_branch
        %359 = sbr.rel (%p357) target = $region44
      $region43: #{_highway_impl.1} parent=5 // pred_region
        %s360 = ssub.s32 %s13, 2
        // Predicated region
        $region45: #{_highway_impl.1} parent=43 // pred_check
          %p361 = pneg %p110
        $region46: #{_highway_impl.1} parent=43 // pred_check_branch
          %363 = sbr.rel (%p361) target = $region48
        $region47: #{_highway_impl.1} parent=43 // pred_region
          %s364 = sand.u32 %s95, 1
          %s365 = scalar_lea.sflag [#allocation4], %s364
          %s366 = sand.u32 %s95, 1
          %s367 = smul.addr %s366, 8
          %s368 = scalar_lea.vmem [#allocation5], %s367
          %370 = dma.done %s365, 128
        $region48: #{_highway_impl.1} parent=43 // pred_fallthru
          _
      $region44: #{_highway_impl.1} parent=5 // pred_fallthru
        _
    $region6: #{_highway_impl.1} parent=1 // loop_footer
      %s17 = sadd.s32 1, %s13
    $region7: #{_highway_impl.1} parent=1 // loop_footer_branch
      %12 = sbr.rel target = $region3
    $region8: #{_highway_impl.1} parent=1 // loop_exit
      _
    %371 = vsyncpa [#allocation3], 1
    %s372 = scalar_lea.sflag [#allocation3], 1
    %373 = vsyncpa %s372, 1
    %374 = vsyncpa [#allocation4], 1
    %s375 = scalar_lea.sflag [#allocation4], 1
    %376 = vsyncpa %s375, 1

// kernel: _highway_impl.1
$region0: #{_highway_impl.1}
  #allocation0 [shape = 'u32[]', space=smem, size = 0x4, offset = 0x4, fixed_abs, tag = 'smem constant byte address 0x4 - core index']
  #allocation1 [shape = 'u32[72,128]{1,0:T(1,128)}', space=vmem, size = 0x9000, scoped, tag = 'internal scratch']
  %s0 = inlined_call_operand.vmem [shape: f32[16,128], index: 0, kind: input, shape index: {}]
  %s1 = inlined_call_operand.hbm [shape: bf16[128,256], index: 1, kind: input, shape index: {}]
  %s2 = inlined_call_operand.vmem [shape: f32[1,256], index: 2, kind: input, shape index: {}]
  %s3 = inlined_call_operand.hbm [shape: f32[16,128], index: 3, kind: output, shape index: {}]
  %s4 = sld [smem:[#allocation0]]
  $region49: #{_highway_impl.1} parent=0
    _
  %s6 = ssub.s32 1, %s4
  %s7 = scalar_select 0, %s6, %s4
  $region1: #{_highway_impl.1} parent=0
    #allocation2 [shape = 'u8[65536]{0}', space=vmem, size = 0x10000, scoped, tag = 'input window, operand 1, single buffered']
    #allocation3 [shape = 's32[2]{0}', space=sflag, size = 0x8, scoped, tag = 'scoped memory for _highway_impl.1']
    #allocation4 [shape = 's32[2]{0}', space=sflag, size = 0x8, scoped, tag = 'scoped memory for _highway_impl.1']
    #allocation5 [shape = 'u8[8192]{0}', space=vmem, size = 0x2000, scoped, tag = 'output window, operand 0']
    %8 = vsyncpa [#allocation3], 0
    %9 = vsyncpa [#allocation4], 0
    %s10 = scalar_lea.sflag [#allocation4], 1
    %11 = vsyncpa %s10, 0
    loop: start=0, step=1, limit=4
    $region2: #{_highway_impl.1} parent=1 // loop_pre_header
      _
    $region3: #{_highway_impl.1} parent=1 // loop_header
      %s13 = sphi 0, %s17
      %p14 = scmp.ge.s32.totalorder %s13, 4
      %s23 = sphi 0, %s25
      %s26 = sphi 0, %s23
      %s27 = sphi 0, %s26
      %s43 = sphi 0, %s27
      %s47 = sphi 0, %s47
      %s49 = sphi 0, %s47
      %s50 = sphi 0, %s49
      %s64 = sphi 0, %s50
      %s68 = sphi 0, %s68
      %s70 = sphi 0, %s68
      %s71 = sphi 0, %s70
      %s85 = sphi 0, %s71
      %s91 = sphi 0, %s93
      %s94 = sphi 0, %s91
      %s95 = sphi 0, %s94
      %s111 = sphi 0, %s95
    $region4: #{_highway_impl.1} parent=1 // loop_header_branch
      %16 = sbr.rel (%p14) target = $region8
    $region5: #{_highway_impl.1} parent=1 // loop_body
      %s18 = ssub.s32 %s13, 1
      %s19 = ssub.s32 %s13, 2
      %s20 = sadd.s32 %s13, 1
      %s21 = ssub.s32 %s13, %s20
      %p22 = scmp.eq.s32.totalorder %s21, 0
      %s24 = sadd.s32 %s23, 1
      %s25 = scalar_select %p22, %s23, %s24
      %p28 = pneg %p22
      %p29 = scmp.eq.s32.totalorder %s13, 1
      %p30 = por %p28, %p29
      %p31 = scmp.ne.s32.totalorder %s23, %s26
      %p32 = scmp.eq.s32.totalorder %s13, 0
      %p33 = por %p31, %p32
      %p34 = scmp.ne.s32.totalorder %s23, %s26
      %p35 = scmp.eq.s32.totalorder %s18, 1
      %p36 = por %p34, %p35
      %p37 = scmp.ne.s32.totalorder %s26, %s27
      %p38 = scmp.eq.s32.totalorder %s18, 0
      %p39 = por %p37, %p38
      %p40 = scmp.ne.s32.totalorder %s26, %s27
      %p41 = scmp.eq.s32.totalorder %s19, 1
      %p42 = por %p40, %p41
      %p44 = scmp.ne.s32.totalorder %s27, %s43
      %p45 = scmp.eq.s32.totalorder %s19, 0
      %p46 = por %p44, %p45
      %s48 = sadd.s32 %s47, 1
      %p51 = scmp.eq.s32.totalorder %s13, 1
      %p52 = scmp.ne.s32.totalorder %s47, %s49
      %p53 = scmp.eq.s32.totalorder %s13, 0
      %p54 = por %p52, %p53
      %p55 = scmp.ne.s32.totalorder %s47, %s49
      %p56 = scmp.eq.s32.totalorder %s18, 1
      %p57 = por %p55, %p56
      %p58 = scmp.ne.s32.totalorder %s49, %s50
      %p59 = scmp.eq.s32.totalorder %s18, 0
      %p60 = por %p58, %p59
      %p61 = scmp.ne.s32.totalorder %s49, %s50
      %p62 = scmp.eq.s32.totalorder %s19, 1
      %p63 = por %p61, %p62
      %p65 = scmp.ne.s32.totalorder %s50, %s64
      %p66 = scmp.eq.s32.totalorder %s19, 0
      %p67 = por %p65, %p66
      %s69 = sadd.s32 %s68, 1
      %p72 = scmp.eq.s32.totalorder %s13, 1
      %p73 = scmp.ne.s32.totalorder %s68, %s70
      %p74 = scmp.eq.s32.totalorder %s13, 0
      %p75 = por %p73, %p74
      %p76 = scmp.ne.s32.totalorder %s68, %s70
      %p77 = scmp.eq.s32.totalorder %s18, 1
      %p78 = por %p76, %p77
      %p79 = scmp.ne.s32.totalorder %s70, %s71
      %p80 = scmp.eq.s32.totalorder %s18, 0
      %p81 = por %p79, %p80
      %p82 = scmp.ne.s32.totalorder %s70, %s71
      %p83 = scmp.eq.s32.totalorder %s19, 1
      %p84 = por %p82, %p83
      %p86 = scmp.ne.s32.totalorder %s71, %s85
      %p87 = scmp.eq.s32.totalorder %s19, 0
      %p88 = por %p86, %p87
      %s89 = ssub.s32 %s13, %s20
      %p90 = scmp.eq.s32.totalorder %s89, 0
      %s92 = sadd.s32 %s91, 1
      %s93 = scalar_select %p90, %s91, %s92
      %p96 = pneg %p90
      %p97 = scmp.eq.s32.totalorder %s13, 1
      %p98 = por %p96, %p97
      %p99 = scmp.ne.s32.totalorder %s91, %s94
      %p100 = scmp.eq.s32.totalorder %s13, 0
      %p101 = por %p99, %p100
      %p102 = scmp.ne.s32.totalorder %s91, %s94
      %p103 = scmp.eq.s32.totalorder %s18, 1
      %p104 = por %p102, %p103
      %p105 = scmp.ne.s32.totalorder %s94, %s95
      %p106 = scmp.eq.s32.totalorder %s18, 0
      %p107 = por %p105, %p106
      %p108 = scmp.ne.s32.totalorder %s94, %s95
      %p109 = scmp.eq.s32.totalorder %s19, 1
      %p110 = por %p108, %p109
      %p112 = scmp.ne.s32.totalorder %s95, %s111
      %p113 = scmp.eq.s32.totalorder %s19, 0
      %p114 = por %p112, %p113
      %p115 = scmp.le.s32.totalorder 1, %s13
      %p116 = scmp.lt.s32.totalorder %s13, 3
      %p117 = pnand %p115, %p116
      %p118 = pneg %p117
      // Predicated region
      $region9: #{_highway_impl.1} parent=5 // pred_check
        _
      $region10: #{_highway_impl.1} parent=5 // pred_check_branch
        %120 = sbr.rel (%p117) target = $region12
      $region11: #{_highway_impl.1} parent=5 // pred_region
        %s121 = ssub.s32 %s13, 1
        // Predicated region
        $region13: #{_highway_impl.1} parent=11 // pred_check
          %p122 = pneg %p60
        $region14: #{_highway_impl.1} parent=11 // pred_check_branch
          %124 = sbr.rel (%p122) target = $region16
        $region15: #{_highway_impl.1} parent=11 // pred_region
          %126 = vsyncadd [#allocation3], 0
          %s127 = sshll.u32 %s1, 4
          %s128 = int_to_ptr.hbm [resolvable:$true] %s127
          %s129 = sshll.u32 [#allocation2], 4
          %s130 = int_to_ptr.vmem [resolvable:$true] %s129
          %135 = dma.hbm_to_vmem [thread:$0]  %s128, 2048, %s130, [#allocation3], 128, 128, 8
        $region16: #{_highway_impl.1} parent=11 // pred_fallthru
          _
        // Predicated region
        $region17: #{_highway_impl.1} parent=11 // pred_check
          %p136 = pneg %p81
        $region18: #{_highway_impl.1} parent=11 // pred_check_branch
          %138 = sbr.rel (%p136) target = $region20
        $region19: #{_highway_impl.1} parent=11 // pred_region
          _
        $region20: #{_highway_impl.1} parent=11 // pred_fallthru
          _
      $region12: #{_highway_impl.1} parent=5 // pred_fallthru
        _
      %p139 = scmp.lt.s32.totalorder %s13, 2
      // Predicated region
      $region21: #{_highway_impl.1} parent=5 // pred_check
        %p140 = pneg %p139
      $region22: #{_highway_impl.1} parent=5 // pred_check_branch
        %142 = sbr.rel (%p140) target = $region24
      $region23: #{_highway_impl.1} parent=5 // pred_region
        // Predicated region
        $region25: #{_highway_impl.1} parent=23 // pred_check
          %p143 = pneg %p33
        $region26: #{_highway_impl.1} parent=23 // pred_check_branch
          %145 = sbr.rel (%p143) target = $region28
        $region27: #{_highway_impl.1} parent=23 // pred_region
          %p146 = scmp.lt.s32.totalorder %s13, 1
          %s147 = scalar_select %p146, %s13, 1
          %s148 = smul.addr %s147, 8
          %s149 = scalar_lea.vmem %s0, %s148
        $region28: #{_highway_impl.1} parent=23 // pred_fallthru
          _
      $region24: #{_highway_impl.1} parent=5 // pred_fallthru
        _
      %p150 = scmp.le.s32.totalorder 1, %s13
      %p151 = scmp.lt.s32.totalorder %s13, 3
      %p152 = pnand %p150, %p151
      %p153 = pneg %p152
      // Predicated region
      $region29: #{_highway_impl.1} parent=5 // pred_check
        _
      $region30: #{_highway_impl.1} parent=5 // pred_check_branch
        %155 = sbr.rel (%p152) target = $region32
      $region31: #{_highway_impl.1} parent=5 // pred_region
        %s156 = ssub.s32 %s13, 1
        // Predicated region
        $region33: #{_highway_impl.1} parent=31 // pred_check
          %p157 = pneg %p60
        $region34: #{_highway_impl.1} parent=31 // pred_check_branch
          %159 = sbr.rel (%p157) target = $region36
        $region35: #{_highway_impl.1} parent=31 // pred_region
          %161 = dma.done [#allocation3], 2048
        $region36: #{_highway_impl.1} parent=31 // pred_fallthru
          _
        %p162 = scmp.lt.s32.totalorder %s18, 1
        %s163 = scalar_select %p162, %s18, 1
        %s164 = smul.addr %s163, 8
        %s165 = scalar_lea.vmem %s0, %s164
        %p166 = pneg %p39
        %p167 = pneg %p36
        %p168 = pneg %p60
        %p169 = pneg %p57
        %p170 = pneg %p81
        %p171 = pneg %p78
        %p172 = pneg %p107
        %p173 = pneg %p104
        %s174 = sand.u32 %s94, 1
        %s175 = scalar_lea.sflag [#allocation4], %s174
        %s176 = sand.u32 %s94, 1
        %s177 = smul.addr %s176, 8
        %s178 = scalar_lea.vmem [#allocation5], %s177
        %p179 = scmp.lt.s32.totalorder %s18, 1
        %s180 = scalar_select %p179, %s18, 1
        %s181 = smul.addr %s180, 8
        %s182 = scalar_lea.vmem %s0, %s181
        %v183 = vld [vmem:[%s182] sm:$0xff]
        %v184 = vpack.c.bf16 %v183, %v183
        %v185 = vld [vmem:[#allocation2] sm:$0xff]
        %v186 = vld [vmem:[#allocation2 + $0x8] sm:$0xff]
        %v187 = vld [vmem:[#allocation2 + $0x10] sm:$0xff]
        %v188 = vld [vmem:[#allocation2 + $0x18] sm:$0xff]
        %v189 = vld [vmem:[#allocation2 + $0x20] sm:$0xff]
        %v190 = vld [vmem:[#allocation2 + $0x28] sm:$0xff]
        %v191 = vld [vmem:[#allocation2 + $0x30] sm:$0xff]
        %v192 = vld [vmem:[#allocation2 + $0x38] sm:$0xff]
        %v193 = vld [vmem:[#allocation2 + $0x40] sm:$0xff]
        %v194 = vld [vmem:[#allocation2 + $0x48] sm:$0xff]
        %v195 = vld [vmem:[#allocation2 + $0x50] sm:$0xff]
        %v196 = vld [vmem:[#allocation2 + $0x58] sm:$0xff]
        %v197 = vld [vmem:[#allocation2 + $0x60] sm:$0xff]
        %v198 = vld [vmem:[#allocation2 + $0x68] sm:$0xff]
        %v199 = vld [vmem:[#allocation2 + $0x70] sm:$0xff]
        %v200 = vld [vmem:[#allocation2 + $0x78] sm:$0xff]
        %v201 = vld [vmem:[%s2] sm:$0x3]
        %v203 = vperm.slane %v201, 0
        %v204 = vperm.slane %v201, 1
        %v223 = vunpack.c.l.b16 %v185
        %v224 = vunpack.c.h.b16 %v185
        %v225 = vunpack.c.l.b16 %v186
        %v226 = vunpack.c.h.b16 %v186
        %v227 = vunpack.c.l.b16 %v187
        %v228 = vunpack.c.h.b16 %v187
        %v229 = vunpack.c.l.b16 %v188
        %v230 = vunpack.c.h.b16 %v188
        %v231 = vunpack.c.l.b16 %v189
        %v232 = vunpack.c.h.b16 %v189
        %v233 = vunpack.c.l.b16 %v190
        %v234 = vunpack.c.h.b16 %v190
        %v235 = vunpack.c.l.b16 %v191
        %v236 = vunpack.c.h.b16 %v191
        %v237 = vunpack.c.l.b16 %v192
        %v238 = vunpack.c.h.b16 %v192
        %v239 = vunpack.c.l.b16 %v193
        %v240 = vunpack.c.h.b16 %v193
        %v241 = vunpack.c.l.b16 %v194
        %v242 = vunpack.c.h.b16 %v194
        %v243 = vunpack.c.l.b16 %v195
        %v244 = vunpack.c.h.b16 %v195
        %v245 = vunpack.c.l.b16 %v196
        %v246 = vunpack.c.h.b16 %v196
        %v247 = vunpack.c.l.b16 %v197
        %v248 = vunpack.c.h.b16 %v197
        %v249 = vunpack.c.l.b16 %v198
        %v250 = vunpack.c.h.b16 %v198
        %v251 = vunpack.c.l.b16 %v199
        %v252 = vunpack.c.h.b16 %v199
        %v253 = vunpack.c.l.b16 %v200
        %v254 = vunpack.c.h.b16 %v200
        %v255 = vpack.c.b16 %v225, %v223
        %v256 = vpack.c.b16 %v226, %v224
        %v257 = vpack.c.b16 %v229, %v227
        %v258 = vpack.c.b16 %v230, %v228
        %v259 = vpack.c.b16 %v233, %v231
        %v260 = vpack.c.b16 %v234, %v232
        %v261 = vpack.c.b16 %v237, %v235
        %v262 = vpack.c.b16 %v238, %v236
        %v263 = vpack.c.b16 %v241, %v239
        %v264 = vpack.c.b16 %v242, %v240
        %v265 = vpack.c.b16 %v245, %v243
        %v266 = vpack.c.b16 %v246, %v244
        %v267 = vpack.c.b16 %v249, %v247
        %v268 = vpack.c.b16 %v250, %v248
        %v269 = vpack.c.b16 %v253, %v251
        %v270 = vpack.c.b16 %v254, %v252
        %287 = vmatpush.bf16.msra.mxu0 %v269
        %288 = vmatpush.bf16.msra.mxu0 %v267
        %289 = vmatpush.bf16.msra.mxu0 %v265
        %290 = vmatpush.bf16.msra.mxu0 %v263
        %291 = vmatpush.bf16.msra.mxu0 %v261
        %292 = vmatpush.bf16.msra.mxu0 %v259
        %293 = vmatpush.bf16.msra.mxu0 %v257
        %294 = vmatpush.bf16.msra.mxu0 %v255
        %295 = vmatmul.bf16.gmra.mxu0 %v184
        %v296 = vpop.f32.mrf.mxu0
        %v297 = vadd.f32 %v203, %v296
        %v298 = vpop.f32.mrf.mxu0
        %299 = vdwg.mxu0
        %300 = vmatpush.bf16.msra.mxu0 %v270
        %301 = vmatpush.bf16.msra.mxu0 %v268
        %302 = vmatpush.bf16.msra.mxu0 %v266
        %303 = vmatpush.bf16.msra.mxu0 %v264
        %304 = vmatpush.bf16.msra.mxu0 %v262
        %305 = vmatpush.bf16.msra.mxu0 %v260
        %306 = vmatpush.bf16.msra.mxu0 %v258
        %307 = vmatpush.bf16.msra.mxu0 %v256
        %308 = vmatmul.bf16.gmra.mxu0 %v184
        %v309 = vpop.f32.mrf.mxu0
        %v310 = vadd.f32 %v204, %v309
        %v311 = vpop.f32.mrf.mxu0
        %312 = vdwg.mxu0
        %v313 = vxor.u32 %v297, 2147483648
        %v314 = vmul.f32 %v313, 1.442695
        %v315 = vpow.pop %v314
        %v316 = vadd.f32 %v315, 1.0
        %v317 = vrcp.pop %v316
        %v318 = vmul.f32 %v316, %v317
        %v319 = vsub.f32 1.0, %v318
        %v320 = vmul.f32 %v317, %v319
        %v321 = vadd.f32 %v317, %v320
        %vm322 = vweird.f32 %v316
        %vm323 = vweird.f32 %v317
        %vm324 = vmor %vm322, %vm323
        %v325 = vsel %vm324, %v317, %v321
        %v326 = vand.u32 2147483647, %v316
        %vm327 = vcmp.eq.f32.partialorder %v326, 8.507059e+37
        %v328 = vand.u32 %v316, 2147483648
        %v329 = vor.u32 1.1754944e-38, %v328
        %v330 = vsel %vm327, %v329, %v325
        %v331 = vmul.f32 1.0, %v330
        %v332 = vmax.f32 %v310, 0.0
        %v333 = vsub.f32 %v332, %v183
        %v334 = vmul.f32 %v331, %v333
        %v335 = vadd.f32 %v183, %v334
        %336 = vst [vmem:[%s178] sm:$0xff] %v335
        %s337 = sand.u32 %s94, 1
        %s338 = scalar_lea.sflag [#allocation4], %s337
        %s339 = sand.u32 %s94, 1
        %s340 = smul.addr %s339, 8
        %s341 = scalar_lea.vmem [#allocation5], %s340
        // Predicated region
        $region37: #{_highway_impl.1} parent=31 // pred_check
          %p342 = pneg %p104
        $region38: #{_highway_impl.1} parent=31 // pred_check_branch
          %344 = sbr.rel (%p342) target = $region40
        $region39: #{_highway_impl.1} parent=31 // pred_region
          %346 = vsyncadd %s338, 0
          %s347 = smul.addr %s18, 8
          %s348 = scalar_lea.hbm %s3, %s347
          %s350 = sshll.u32 %s341, 4
          %s351 = int_to_ptr.vmem [resolvable:$true] %s350
          %s352 = sshll.u32 %s348, 4
          %s353 = int_to_ptr.hbm [resolvable:$true] %s352
          %355 = dma.vmem_to_hbm [thread:$0]  %s351, 128, %s353, %s338
        $region40: #{_highway_impl.1} parent=31 // pred_fallthru
          _
      $region32: #{_highway_impl.1} parent=5 // pred_fallthru
        _
      %p356 = scmp.le.s32.totalorder 2, %s13
      // Predicated region
      $region41: #{_highway_impl.1} parent=5 // pred_check
        %p357 = pneg %p356
      $region42: #{_highway_impl.1} parent=5 // pred_check_branch
        %359 = sbr.rel (%p357) target = $region44
      $region43: #{_highway_impl.1} parent=5 // pred_region
        %s360 = ssub.s32 %s13, 2
        // Predicated region
        $region45: #{_highway_impl.1} parent=43 // pred_check
          %p361 = pneg %p110
        $region46: #{_highway_impl.1} parent=43 // pred_check_branch
          %363 = sbr.rel (%p361) target = $region48
        $region47: #{_highway_impl.1} parent=43 // pred_region
          %s364 = sand.u32 %s95, 1
          %s365 = scalar_lea.sflag [#allocation4], %s364
          %s366 = sand.u32 %s95, 1
          %s367 = smul.addr %s366, 8
          %s368 = scalar_lea.vmem [#allocation5], %s367
          %370 = dma.done %s365, 128
        $region48: #{_highway_impl.1} parent=43 // pred_fallthru
          _
      $region44: #{_highway_impl.1} parent=5 // pred_fallthru
        _
    $region6: #{_highway_impl.1} parent=1 // loop_footer
      %s17 = sadd.s32 1, %s13
    $region7: #{_highway_impl.1} parent=1 // loop_footer_branch
      %12 = sbr.rel target = $region3
    $region8: #{_highway_impl.1} parent=1 // loop_exit
      _
    %371 = vsyncpa [#allocation3], 1
    %s372 = scalar_lea.sflag [#allocation3], 1
    %373 = vsyncpa %s372, 1
    %374 = vsyncpa [#allocation4], 1
    %s375 = scalar_lea.sflag [#allocation4], 1
    %376 = vsyncpa %s375, 1

</llo_original>
